<compile_context>
chip_gen: v5e
topology: v5e:2x2
jax: 0.10.0
libtpu: 0.0.40
codegen_flags: <defaults>
</compile_context>

<pallas_src>
import functools

import jax
import jax.numpy as jnp
from jax import lax
from jax.experimental import pallas as pl
from jax.experimental.pallas import tpu as pltpu


def _round_up(x, m):
    return ((x + m - 1) // m) * m


def _vmem_capacity_bytes():
    """Per-core VMEM capacity; conservative default if the query fails."""
    try:
        cap = int(pltpu.get_tpu_info().vmem_capacity_bytes)
        if cap > 0:
            return cap
    except Exception:
        pass
    return 64 * 1024 * 1024  # v7x per-TensorCore VMEM (smallest of v5e/v6e/v7x)


def _choose_tm(m, d, h):
    """Pick the M-tile.

    Sized by bytes so the working set (x double-buffer at its lane-padded
    width + output blocks + the (H, tm) f32 intermediate) stays inside a
    generation-aware VMEM budget, while keeping >= ~4 grid steps when M is
    large enough (v7x has 2 TensorCores; a single giant tile would serialize
    on one core and starve the DMA pipeline).
    """
    budget = (_vmem_capacity_bytes() * 3) // 8    # ~24 MiB v7x, ~48 MiB v5e/v6e
    d_lanes = _round_up(max(d, 1), 128)           # minor dim pads to 128 lanes
    h_sub = _round_up(max(h, 1), 8)
    bytes_per_row = (
        2 * d_lanes * 4      # x tile (f32), double-buffered
        + 2 * 8 * 4          # (1, tm) out block (padded to 8 sublanes), dbl-buf
        + 2 * h_sub * 4      # (H, tm) f32 intermediates (h, relu(h))
    )
    tm = max(128, (budget // bytes_per_row) // 128 * 128)
    if m >= 4 * 128:                              # keep >= ~4 grid steps
        tm = min(tm, _round_up(pl.cdiv(m, 4), 128))
    tm = min(tm, _round_up(m, 128))               # never exceed (rounded) M
    return tm


def mlp_kernel(x_ref, w1_ref, b1_ref, w2_ref, b2_ref, o_ref):
    # x:  (TM, D) f32   -- tile of flattened input rows (f32 straight from HBM)
    # w1: (H, D)  f32   -- torch Linear.weight layout (out, in), grid-invariant
    # b1: (H, 1)  f32   -- grid-invariant
    # w2: (H, 1)  f32   -- second Linear weight, grid-invariant
    # b2: (1, 1)  f32   -- scalar bias in SMEM
    # o:  (1, TM) f32   -- lane-dense output tile
    x = x_ref[...]
    w1 = w1_ref[...]

    # h^T = W1 @ x^T : contract D (minor dim of both) -> (H, TM), TM on lanes.
    # TODO(synk): inspect the Mosaic lowering (pl.lower_as_mlir / bundle dump)
    # for a full-tile vxpose of x caused by contracting the rhs minor dim; if
    # one is emitted, restructure the contraction so the XLU stays off the
    # critical path at large TM.
    h = lax.dot_general(
        w1, x,
        dimension_numbers=(((1,), (1,)), ((), ())),
        preferred_element_type=jnp.float32,
    )
    h = jnp.maximum(h + b1_ref[...], 0.0)  # bias + ReLU, f32 on VPU

    # Second Linear has output width 1: VPU multiply + sublane reduction
    # instead of a width-1 MXU matmul; result stays lane-dense in TM.
    o = jnp.sum(h * w2_ref[...], axis=0, keepdims=True) + b2_ref[0, 0]
    o_ref[...] = o.astype(o_ref.dtype)


def _in_specs(tm, d, h, single_buffer_weights):
    x_spec = pl.BlockSpec((tm, d), lambda i: (i, 0))   # pipelined over M
    w_kw = {}
    if single_buffer_weights:
        # Grid-invariant operands are fetched once; single-buffer them so they
        # do not hold 2x VMEM (matters once H/D grow / are padded up).
        w_kw = dict(pipeline_mode=pl.Buffered(1))
    return [
        x_spec,
        pl.BlockSpec((h, d), lambda i: (0, 0), **w_kw),   # w1 resident
        pl.BlockSpec((h, 1), lambda i: (0, 0), **w_kw),   # b1 resident
        pl.BlockSpec((h, 1), lambda i: (0, 0), **w_kw),   # w2 resident
        pl.BlockSpec(memory_space=pltpu.MemorySpace.SMEM),  # b2 scalar
    ]


@functools.partial(jax.jit, static_argnames=("single_buffer_weights",))
def _mlp_forward(x, w1, b1, w2, b2, *, single_buffer_weights):
    """SamplerFlops.forward(x, backbone='mlp') with mlp_type='mlp'.

    x:  (B, num_frm, input_dim) float32
    w1: (hidden_dim, input_dim)   -- torch Linear.weight layout
    b1: (hidden_dim,)
    w2: (hidden_dim,)             -- flattened (1, hidden_dim) torch weight
    b2: ()                        -- scalar bias
    returns: (B, num_frm) float32 -- .squeeze(-1) of the final Linear
    """
    B, N, D = x.shape
    H = w1.shape[0]
    M = B * N

    tm = _choose_tm(M, D, H)
    # No jnp.pad: grid covers M with cdiv; the tail block is a partial Pallas
    # block whose out-of-bounds rows only produce masked (discarded) output
    # columns.  There is no reduction over M inside the kernel.
    grid = (pl.cdiv(M, tm),)

    x2 = x.reshape(M, D).astype(jnp.float32)       # free reshape, no HBM pass
    w1c = w1.astype(jnp.float32)
    b1c = b1.reshape(H, 1).astype(jnp.float32)
    w2c = w2.reshape(H, 1).astype(jnp.float32)
    b2c = b2.reshape(1, 1).astype(jnp.float32)

    cost = pl.CostEstimate(
        flops=2 * M * (D * H + H),
        transcendentals=0,
        bytes_accessed=(M * D * 4          # x (f32)
                        + H * D * 4        # w1
                        + 2 * H * 4 + 4    # b1, w2, b2
                        + M * 4),          # output (f32)
    )

    out = pl.pallas_call(
        mlp_kernel,
        out_shape=jax.ShapeDtypeStruct((1, M), jnp.float32),
        grid=grid,
        in_specs=_in_specs(tm, D, H, single_buffer_weights),
        out_specs=pl.BlockSpec((1, tm), lambda i: (0, i)),   # lane-dense stores
        compiler_params=pltpu.CompilerParams(
            dimension_semantics=("parallel",),
            vmem_limit_bytes=_vmem_capacity_bytes() // 2,
        ),
        cost_estimate=cost,
    )(x2, w1c, b1c, w2c, b2c)

    return out[0].reshape(B, N)


# Whether this Pallas build accepts pipeline_mode=pl.Buffered(1) on the
# grid-invariant weight specs; flipped to False on first failure.
_WEIGHT_SINGLE_BUFFER = True


def sampler_flops_mlp(x, w1, b1, w2, b2):
    global _WEIGHT_SINGLE_BUFFER
    try:
        return _mlp_forward(x, w1, b1, w2, b2,
                            single_buffer_weights=_WEIGHT_SINGLE_BUFFER)
    except Exception:
        if not _WEIGHT_SINGLE_BUFFER:
            raise
        _WEIGHT_SINGLE_BUFFER = False
        return _mlp_forward(x, w1, b1, w2, b2, single_buffer_weights=False)


def sampler_flops_forward(x, params, backbone):
    """Mirrors SamplerFlops.forward dispatch."""
    if backbone == "mlp":
        return sampler_flops_mlp(x, *params)
    elif backbone in ("transformer", "lstm", "bilstm"):
        # Reference get_rnn_flops() has no return value -> None.
        return None
    else:
        # TODO(synk): pretrained CNN backbone (resnet50 / mobilenet) not translated.
        return None


def init_params(key, input_dim, hidden_dim):
    """kaiming_normal_ (fan_in, gain=sqrt(2)) weights; zero biases (torch layout)."""
    k1, k2 = jax.random.split(key)
    std1 = (2.0 / input_dim) ** 0.5
    std2 = (2.0 / hidden_dim) ** 0.5
    w1 = jax.random.normal(k1, (hidden_dim, input_dim), jnp.float32) * std1
    b1 = jnp.zeros((hidden_dim,), jnp.float32)
    w2 = jax.random.normal(k2, (hidden_dim,), jnp.float32) * std2
    b2 = jnp.zeros((), jnp.float32)
    return w1, b1, w2, b2


def _reference(x, params):
    """Pure-JAX f32 reference (forced f32 accumulation in the dots)."""
    w1, b1, w2, b2 = params
    B, N, D = x.shape
    xf = x.reshape(-1, D)
    h = jnp.maximum(
        jnp.einsum("md,hd->mh", xf, w1,
                   precision=jax.lax.Precision.HIGHEST) + b1[None, :], 0.0)
    o = jnp.einsum("mh,h->m", h, w2, precision=jax.lax.Precision.HIGHEST) + b2
    return o.reshape(B, N)


if __name__ == "__main__":
    key = jax.random.PRNGKey(0)
    kx, kp, kx2 = jax.random.split(key, 3)

    B, num_frm, input_dim, hidden_dim = 2, 8, 32, 32
    x = jax.random.normal(kx, (B, num_frm, input_dim), jnp.float32)
    params = init_params(kp, input_dim, hidden_dim)

    out = sampler_flops_forward(x, params, backbone="mlp")
    out = jax.block_until_ready(out)
    assert out.shape == (B, num_frm), out.shape

    # Tolerance holds even if the MXU's f32 path internally uses bf16 passes;
    # with true f32 MXU passes the error is ~1e-6.
    ref = _reference(x, params)
    assert jnp.allclose(out, ref, atol=3e-2, rtol=3e-2), (
        float(jnp.max(jnp.abs(out - ref))))

    # Second shape: multi-step grid with a partial (non-divisible) tail block,
    # exercising the no-pad path.
    B2, num_frm2 = 4, 200
    x2 = jax.random.normal(kx2, (B2, num_frm2, input_dim), jnp.float32)
    out2 = jax.block_until_ready(sampler_flops_forward(x2, params, backbone="mlp"))
    assert out2.shape == (B2, num_frm2), out2.shape
    ref2 = _reference(x2, params)
    assert jnp.allclose(out2, ref2, atol=3e-2, rtol=3e-2), (
        float(jnp.max(jnp.abs(out2 - ref2))))

    # Non-mlp backbones mirror the reference (return None / untranslated).
    assert sampler_flops_forward(x, params, backbone="lstm") is None

    print("KERNEL_OK")
</pallas_src>

<mosaic_0001>
module attributes {stable_mosaic.version = 11 : i64} {
  func.func @mlp_kernel(%arg0: i32, %arg1: memref<128x32xf32, #tpu.memory_space<vmem>>, %arg2: memref<32x32xf32, #tpu.memory_space<vmem>>, %arg3: memref<32x1xf32, #tpu.memory_space<vmem>>, %arg4: memref<32x1xf32, #tpu.memory_space<vmem>>, %arg5: memref<1x1xf32, #tpu.memory_space<smem>>, %arg6: memref<1x128xf32, #tpu.memory_space<vmem>>) attributes {dimension_semantics = [#tpu.dimension_semantics<parallel>], iteration_bounds = array<i64: 1>, scalar_prefetch = 0 : i64, scratch_operands = 0 : i64, tpu.core_type = #tpu.core_type<tc>, window_params = [{transform_indices = @transform_0, window_bounds = array<i64: 128, 32>}, {pipeline_mode = #tpu.pipeline_mode<synchronous>, transform_indices = @transform_1, window_bounds = array<i64: 32, 32>}, {pipeline_mode = #tpu.pipeline_mode<synchronous>, transform_indices = @transform_2, window_bounds = array<i64: 32, 1>}, {pipeline_mode = #tpu.pipeline_mode<synchronous>, transform_indices = @transform_3, window_bounds = array<i64: 32, 1>}, {transform_indices = @transform_4, window_bounds = array<i64: 1, 1>}, {transform_indices = @transform_5, window_bounds = array<i64: 1, 128>}]} {
    %c0 = arith.constant 0 : index
    %c0_0 = arith.constant 0 : index
    %0 = vector.load %arg1[%c0, %c0_0] : memref<128x32xf32, #tpu.memory_space<vmem>>, vector<128x32xf32>
    %c0_1 = arith.constant 0 : index
    %c0_2 = arith.constant 0 : index
    %1 = vector.load %arg2[%c0_1, %c0_2] : memref<32x32xf32, #tpu.memory_space<vmem>>, vector<32x32xf32>
    %cst = arith.constant dense<0.000000e+00> : vector<32x128xf32>
    %2 = tpu.matmul %1, %0, %cst {dimension_numbers = #tpu.dot_dimension_numbers<[1], [1], [0], [0], [0, 0, 1, 0], [], []>} : vector<32x32xf32>, vector<128x32xf32>, vector<32x128xf32> -> vector<32x128xf32>
    %c0_3 = arith.constant 0 : index
    %c0_4 = arith.constant 0 : index
    %3 = vector.load %arg3[%c0_3, %c0_4] : memref<32x1xf32, #tpu.memory_space<vmem>>, vector<32x1xf32>
    %4 = vector.broadcast %3 : vector<32x1xf32> to vector<32x128xf32>
    %5 = arith.addf %2, %4 : vector<32x128xf32>
    %cst_5 = arith.constant 0.000000e+00 : f32
    %6 = vector.broadcast %cst_5 : f32 to vector<32x128xf32>
    %7 = arith.maximumf %5, %6 : vector<32x128xf32>
    %c0_6 = arith.constant 0 : index
    %c0_7 = arith.constant 0 : index
    %8 = vector.load %arg4[%c0_6, %c0_7] : memref<32x1xf32, #tpu.memory_space<vmem>>, vector<32x1xf32>
    %9 = vector.broadcast %8 : vector<32x1xf32> to vector<32x128xf32>
    %10 = arith.mulf %7, %9 : vector<32x128xf32>
    %cst_8 = arith.constant dense<0.000000e+00> : vector<128xf32>
    %11 = vector.multi_reduction <add>, %10, %cst_8 [0] : vector<32x128xf32> to vector<128xf32>
    %12 = vector.shape_cast %11 : vector<128xf32> to vector<1x128xf32>
    %c0_9 = arith.constant 0 : index
    %c0_10 = arith.constant 0 : index
    %13 = memref.load %arg5[%c0_9, %c0_10] : memref<1x1xf32, #tpu.memory_space<smem>>
    %14 = vector.broadcast %13 : f32 to vector<1x128xf32>
    %15 = arith.addf %12, %14 : vector<1x128xf32>
    %c0_11 = arith.constant 0 : index
    %c0_12 = arith.constant 0 : index
    %16 = vector.load %arg6[%c0_11, %c0_12] : memref<1x128xf32, #tpu.memory_space<vmem>>, vector<1x128xf32>
    tpu.vector_store %arg6[%c0_11, %c0_12], %15 {strides = array<i32>} : memref<1x128xf32, #tpu.memory_space<vmem>>, vector<1x128xf32>,
    return
  }
  func.func @transform_0(%arg0: i32) -> (i32, i32) {
    %c0_i32 = arith.constant 0 : i32
    %c0_i32_0 = arith.constant 0 : i32
    return %arg0, %c0_i32 : i32, i32
  }
  func.func @transform_1(%arg0: i32) -> (i32, i32) {
    %c0_i32 = arith.constant 0 : i32
    %c0_i32_0 = arith.constant 0 : i32
    %c0_i32_1 = arith.constant 0 : i32
    return %c0_i32, %c0_i32_0 : i32, i32
  }
  func.func @transform_2(%arg0: i32) -> (i32, i32) {
    %c0_i32 = arith.constant 0 : i32
    %c0_i32_0 = arith.constant 0 : i32
    %c0_i32_1 = arith.constant 0 : i32
    return %c0_i32, %c0_i32_0 : i32, i32
  }
  func.func @transform_3(%arg0: i32) -> (i32, i32) {
    %c0_i32 = arith.constant 0 : i32
    %c0_i32_0 = arith.constant 0 : i32
    %c0_i32_1 = arith.constant 0 : i32
    return %c0_i32, %c0_i32_0 : i32, i32
  }
  func.func @transform_4(%arg0: i32) -> (i32, i32) {
    %c0_i32 = arith.constant 0 : i32
    %c0_i32_0 = arith.constant 0 : i32
    %c0_i32_1 = arith.constant 0 : i32
    return %c0_i32, %c0_i32_0 : i32, i32
  }
  func.func @transform_5(%arg0: i32) -> (i32, i32) {
    %c0_i32 = arith.constant 0 : i32
    %c0_i32_0 = arith.constant 0 : i32
    return %c0_i32, %arg0 : i32, i32
  }
}

module attributes {stable_mosaic.version = 11 : i64} {
  func.func @mlp_kernel(%arg0: i32, %arg1: memref<128x32xf32, #tpu.memory_space<vmem>>, %arg2: memref<32x32xf32, #tpu.memory_space<vmem>>, %arg3: memref<32x1xf32, #tpu.memory_space<vmem>>, %arg4: memref<32x1xf32, #tpu.memory_space<vmem>>, %arg5: memref<1x1xf32, #tpu.memory_space<smem>>, %arg6: memref<1x128xf32, #tpu.memory_space<vmem>>) attributes {dimension_semantics = [#tpu.dimension_semantics<parallel>], iteration_bounds = array<i64: 1>, scalar_prefetch = 0 : i64, scratch_operands = 0 : i64, tpu.core_type = #tpu.core_type<tc>, window_params = [{transform_indices = @transform_0, window_bounds = array<i64: 128, 32>}, {pipeline_mode = #tpu.pipeline_mode<synchronous>, transform_indices = @transform_1, window_bounds = array<i64: 32, 32>}, {pipeline_mode = #tpu.pipeline_mode<synchronous>, transform_indices = @transform_2, window_bounds = array<i64: 32, 1>}, {pipeline_mode = #tpu.pipeline_mode<synchronous>, transform_indices = @transform_3, window_bounds = array<i64: 32, 1>}, {transform_indices = @transform_4, window_bounds = array<i64: 1, 1>}, {transform_indices = @transform_5, window_bounds = array<i64: 1, 128>}]} {
    %c0 = arith.constant 0 : index
    %c0_0 = arith.constant 0 : index
    %0 = vector.load %arg1[%c0, %c0_0] : memref<128x32xf32, #tpu.memory_space<vmem>>, vector<128x32xf32>
    %c0_1 = arith.constant 0 : index
    %c0_2 = arith.constant 0 : index
    %1 = vector.load %arg2[%c0_1, %c0_2] : memref<32x32xf32, #tpu.memory_space<vmem>>, vector<32x32xf32>
    %cst = arith.constant dense<0.000000e+00> : vector<32x128xf32>
    %2 = tpu.matmul %1, %0, %cst {dimension_numbers = #tpu.dot_dimension_numbers<[1], [1], [0], [0], [0, 0, 1, 0], [], []>} : vector<32x32xf32>, vector<128x32xf32>, vector<32x128xf32> -> vector<32x128xf32>
    %c0_3 = arith.constant 0 : index
    %c0_4 = arith.constant 0 : index
    %3 = vector.load %arg3[%c0_3, %c0_4] : memref<32x1xf32, #tpu.memory_space<vmem>>, vector<32x1xf32>
    %4 = vector.broadcast %3 : vector<32x1xf32> to vector<32x128xf32>
    %5 = arith.addf %2, %4 : vector<32x128xf32>
    %cst_5 = arith.constant 0.000000e+00 : f32
    %6 = vector.broadcast %cst_5 : f32 to vector<32x128xf32>
    %7 = arith.maximumf %5, %6 : vector<32x128xf32>
    %c0_6 = arith.constant 0 : index
    %c0_7 = arith.constant 0 : index
    %8 = vector.load %arg4[%c0_6, %c0_7] : memref<32x1xf32, #tpu.memory_space<vmem>>, vector<32x1xf32>
    %9 = vector.broadcast %8 : vector<32x1xf32> to vector<32x128xf32>
    %10 = arith.mulf %7, %9 : vector<32x128xf32>
    %cst_8 = arith.constant dense<0.000000e+00> : vector<128xf32>
    %11 = vector.multi_reduction <add>, %10, %cst_8 [0] : vector<32x128xf32> to vector<128xf32>
    %12 = vector.shape_cast %11 : vector<128xf32> to vector<1x128xf32>
    %c0_9 = arith.constant 0 : index
    %c0_10 = arith.constant 0 : index
    %13 = memref.load %arg5[%c0_9, %c0_10] : memref<1x1xf32, #tpu.memory_space<smem>>
    %14 = vector.broadcast %13 : f32 to vector<1x128xf32>
    %15 = arith.addf %12, %14 : vector<1x128xf32>
    %c0_11 = arith.constant 0 : index
    %c0_12 = arith.constant 0 : index
    %16 = vector.load %arg6[%c0_11, %c0_12] : memref<1x128xf32, #tpu.memory_space<vmem>>, vector<1x128xf32>
    tpu.vector_store %arg6[%c0_11, %c0_12], %15 {strides = array<i32>} : memref<1x128xf32, #tpu.memory_space<vmem>>, vector<1x128xf32>,
    return
  }
  func.func @transform_0(%arg0: i32) -> (i32, i32) {
    %c0_i32 = arith.constant 0 : i32
    %c0_i32_0 = arith.constant 0 : i32
    return %arg0, %c0_i32 : i32, i32
  }
  func.func @transform_1(%arg0: i32) -> (i32, i32) {
    %c0_i32 = arith.constant 0 : i32
    %c0_i32_0 = arith.constant 0 : i32
    %c0_i32_1 = arith.constant 0 : i32
    return %c0_i32, %c0_i32_0 : i32, i32
  }
  func.func @transform_2(%arg0: i32) -> (i32, i32) {
    %c0_i32 = arith.constant 0 : i32
    %c0_i32_0 = arith.constant 0 : i32
    %c0_i32_1 = arith.constant 0 : i32
    return %c0_i32, %c0_i32_0 : i32, i32
  }
  func.func @transform_3(%arg0: i32) -> (i32, i32) {
    %c0_i32 = arith.constant 0 : i32
    %c0_i32_0 = arith.constant 0 : i32
    %c0_i32_1 = arith.constant 0 : i32
    return %c0_i32, %c0_i32_0 : i32, i32
  }
  func.func @transform_4(%arg0: i32) -> (i32, i32) {
    %c0_i32 = arith.constant 0 : i32
    %c0_i32_0 = arith.constant 0 : i32
    %c0_i32_1 = arith.constant 0 : i32
    return %c0_i32, %c0_i32_0 : i32, i32
  }
  func.func @transform_5(%arg0: i32) -> (i32, i32) {
    %c0_i32 = arith.constant 0 : i32
    %c0_i32_0 = arith.constant 0 : i32
    return %c0_i32, %arg0 : i32, i32
  }
}

</mosaic_0001>

<llo_original>
// kernel: squeeze.1
$region0: #{squeeze.1}
  %s0 = inlined_call_operand.vmem [shape: f32[16], index: 0, kind: input, shape index: {}]
  %s1 = inlined_call_operand.hbm [shape: f32[2,8], index: 1, kind: output, shape index: {}]
  $region1: #{squeeze.1} parent=0
    #allocation0 [shape = 'u8[1024]{0}', space=vmem, size = 0x400, scoped, tag = 'operand span for operand 1']
    #allocation1 [shape = 's32[1]{0}', space=sflag, size = 0x4, scoped, tag = 'scoped memory for squeeze.1']
    #allocation2 [shape = 'u8[4096]{0}', space=vmem, size = 0x1000, scoped, tag = 'scoped mem for output reshape']
    #allocation3 [shape = 'u8[4096]{0}', space=vmem, size = 0x1000, scoped, tag = 'scoped mem for input reshape']
    %2 = vsyncpa [#allocation1], 0
    %s4 = ssub.s32 2, 1
    %v5 = vld [vmem:[%s0] sm:%s4]
    %6 = vst [vmem:[#allocation3] sm:%s4] %v5
    %v7 = vld [vmem:[#allocation3] sm:$0x1]
    %vm8 = vcmask 64512
    %9 = vst.msk [vmem:[#allocation2] sm:$0x1] %vm8, %v7
    %v10 = vld [vmem:[#allocation3] sm:$0x1]
    %11 = vrot.lane.b32.xlu0 %v10, 120
    %v12 = vpop.permute.xlu0 %11
    %vm13 = vcmask 64512
    %s14 = scalar_lea.vmem [#allocation2], 1
    %15 = vst.msk [vmem:[%s14] sm:$0x1] %vm13, %v12
    %s17 = ssub.s32 4, 1
    %v18 = vld [vmem:[#allocation2] sm:%s17]
    %s20 = ssub.s32 4, 1
    %21 = vst [vmem:[#allocation0] sm:%s20] %v18
    %23 = vsyncadd [#allocation1], 0
    %s25 = sshll.u32 [#allocation0], 4
    %s26 = int_to_ptr.vmem [resolvable:$true] %s25
    %s27 = sshll.u32 %s1, 4
    %s28 = int_to_ptr.hbm [resolvable:$true] %s27
    %30 = dma.vmem_to_hbm [thread:$0]  %s26, 32, %s28, [#allocation1]
    %32 = dma.done [#allocation1], 32
    %33 = vsyncpa [#allocation1], 1

// kernel: _mlp_forward.1
$region0: #{_mlp_forward.1}
  #allocation0 [shape = 'u32[]', space=smem, size = 0x4, offset = 0x4, fixed_abs, tag = 'smem constant byte address 0x4 - core index']
  #allocation1 [shape = 'u32[72,128]{1,0:T(1,128)}', space=vmem, size = 0x9000, scoped, tag = 'internal scratch']
  #allocation2 [shape = 'f32[1,1]{1,0:T(1,128)S(6)}', space=smem, size = 0x200, scoped, tag = 'scoped memory for _mlp_forward.1']
  %s0 = inlined_call_operand.vmem [shape: f32[16,32], index: 0, kind: input, shape index: {}]
  %s1 = inlined_call_operand.vmem [shape: f32[32,32], index: 1, kind: input, shape index: {}]
  %s2 = inlined_call_operand.vmem [shape: f32[32,1], index: 2, kind: input, shape index: {}]
  %s3 = inlined_call_operand.vmem [shape: f32[32,1], index: 3, kind: input, shape index: {}]
  %s4 = inlined_call_operand.<no memory space> [shape: f32[1,1], index: 4, kind: input, shape index: {}]
  %s5 = inlined_call_operand.vmem [shape: f32[1,16], index: 5, kind: output, shape index: {}]
  %s6 = sld [smem:[#allocation0]]
  $region30: #{_mlp_forward.1} parent=0
    _
  %s8 = ssub.s32 1, %s6
  %s9 = scalar_select 0, %s8, %s6
  %10 = sst [smem:[#allocation2]] %s4
  // Predicated region
  $region2: #{_mlp_forward.1} parent=0 // pred_check
    _
  $region3: #{_mlp_forward.1} parent=0 // pred_check_branch
    %12 = sbr.rel (0) target = $region5
  $region4: #{_mlp_forward.1} parent=0 // pred_region
    _
  $region5: #{_mlp_forward.1} parent=0 // pred_fallthru
    _
  // Predicated region
  $region6: #{_mlp_forward.1} parent=0 // pred_check
    _
  $region7: #{_mlp_forward.1} parent=0 // pred_check_branch
    %14 = sbr.rel (0) target = $region9
  $region8: #{_mlp_forward.1} parent=0 // pred_region
    _
  $region9: #{_mlp_forward.1} parent=0 // pred_fallthru
    _
  // Predicated region
  $region10: #{_mlp_forward.1} parent=0 // pred_check
    _
  $region11: #{_mlp_forward.1} parent=0 // pred_check_branch
    %16 = sbr.rel (0) target = $region13
  $region12: #{_mlp_forward.1} parent=0 // pred_region
    _
  $region13: #{_mlp_forward.1} parent=0 // pred_fallthru
    _
  // Predicated region
  $region14: #{_mlp_forward.1} parent=0 // pred_check
    _
  $region15: #{_mlp_forward.1} parent=0 // pred_check_branch
    %18 = sbr.rel (0) target = $region17
  $region16: #{_mlp_forward.1} parent=0 // pred_region
    _
  $region17: #{_mlp_forward.1} parent=0 // pred_fallthru
    _
  // Predicated region
  $region18: #{_mlp_forward.1} parent=0 // pred_check
    _
  $region19: #{_mlp_forward.1} parent=0 // pred_check_branch
    %20 = sbr.rel (0) target = $region21
  $region20: #{_mlp_forward.1} parent=0 // pred_region
    _
  $region21: #{_mlp_forward.1} parent=0 // pred_fallthru
    _
  %v21 = vld [vmem:[%s0] sm:$0xff]
  %v22 = vld [vmem:[%s0 + $0x8] sm:$0xff]
  %v23 = vld [vmem:[%s0 + $0x10] sm:$0xff]
  %v24 = vld [vmem:[%s0 + $0x18] sm:$0xff]
  %v25 = vld [vmem:[%s0 + $0x20] sm:$0xff]
  %v26 = vld [vmem:[%s0 + $0x28] sm:$0xff]
  %v27 = vld [vmem:[%s0 + $0x30] sm:$0xff]
  %v28 = vld [vmem:[%s0 + $0x38] sm:$0xff]
  %v29 = vld [vmem:[%s0 + $0x40] sm:$0xff]
  %v30 = vld [vmem:[%s0 + $0x48] sm:$0xff]
  %v31 = vld [vmem:[%s0 + $0x50] sm:$0xff]
  %v32 = vld [vmem:[%s0 + $0x58] sm:$0xff]
  %v33 = vld [vmem:[%s0 + $0x60] sm:$0xff]
  %v34 = vld [vmem:[%s0 + $0x68] sm:$0xff]
  %v35 = vld [vmem:[%s0 + $0x70] sm:$0xff]
  %v36 = vld [vmem:[%s0 + $0x78] sm:$0xff]
  %v37 = vld [vmem:[%s1] sm:$0xff]
  %v38 = vld [vmem:[%s1 + $0x8] sm:$0xff]
  %v39 = vld [vmem:[%s1 + $0x10] sm:$0xff]
  %v40 = vld [vmem:[%s1 + $0x18] sm:$0xff]
  %v41 = vld [vmem:[%s2] sm:$0xff]
  %v42 = vld [vmem:[%s2 + $0x8] sm:$0xff]
  %v43 = vld [vmem:[%s2 + $0x10] sm:$0xff]
  %v44 = vld [vmem:[%s2 + $0x18] sm:$0xff]
  %46 = vset.pattern.permute.xlu0 0
  %47 = vperm.xlu0 %46, %v41
  %v48 = vpop.permute.xlu0 %47
  %51 = vset.pattern.permute.xlu0 0
  %52 = vperm.xlu0 %51, %v42
  %v53 = vpop.permute.xlu0 %52
  %56 = vset.pattern.permute.xlu0 0
  %57 = vperm.xlu0 %56, %v43
  %v58 = vpop.permute.xlu0 %57
  %61 = vset.pattern.permute.xlu0 0
  %62 = vperm.xlu0 %61, %v44
  %v63 = vpop.permute.xlu0 %62
  %vm65 = vcmask 261120
  %v67 = vsel %vm65, %v37, 0
  %v70 = vsel %vm65, %v38, 0
  %v73 = vsel %vm65, %v39, 0
  %v76 = vsel %vm65, %v40, 0
  %v79 = vsel %vm65, %v21, 0
  %v82 = vsel %vm65, %v22, 0
  %v85 = vsel %vm65, %v23, 0
  %v88 = vsel %vm65, %v24, 0
  %v91 = vsel %vm65, %v25, 0
  %v94 = vsel %vm65, %v26, 0
  %v97 = vsel %vm65, %v27, 0
  %v100 = vsel %vm65, %v28, 0
  %v103 = vsel %vm65, %v29, 0
  %v106 = vsel %vm65, %v30, 0
  %v109 = vsel %vm65, %v31, 0
  %v112 = vsel %vm65, %v32, 0
  %v115 = vsel %vm65, %v33, 0
  %v118 = vsel %vm65, %v34, 0
  %v121 = vsel %vm65, %v35, 0
  %v124 = vsel %vm65, %v36, 0
  %126 = vmatpush.xpose.msra.mxu0 %v124
  %127 = vmatpush.xpose.msra.mxu0 %v121
  %128 = vmatpush.xpose.msra.mxu0 %v118
  %129 = vmatpush.xpose.msra.mxu0 %v115
  %130 = vmatpush.xpose.msra.mxu0 %v112
  %131 = vmatpush.xpose.msra.mxu0 %v109
  %132 = vmatpush.xpose.msra.mxu0 %v106
  %133 = vmatpush.xpose.msra.mxu0 %v103
  %134 = vmatpush.xpose.msra.mxu0 %v100
  %135 = vmatpush.xpose.msra.mxu0 %v97
  %136 = vmatpush.xpose.msra.mxu0 %v94
  %137 = vmatpush.xpose.msra.mxu0 %v91
  %138 = vmatpush.xpose.msra.mxu0 %v88
  %139 = vmatpush.xpose.msra.mxu0 %v85
  %140 = vmatpush.xpose.msra.mxu0 %v82
  %141 = vmatpush.xpose.msra.mxu0 %v79
  %142 = vmatmul.f32.gmra.mxu0 %v67
  %v143 = vpop.f32.mrf.mxu0
  %v144 = vadd.f32 %v48, %v143
  %145 = vmatmul.f32.gmra.mxu0 %v70
  %v146 = vpop.f32.mrf.mxu0
  %v147 = vadd.f32 %v53, %v146
  %148 = vmatmul.f32.gmra.mxu0 %v73
  %v149 = vpop.f32.mrf.mxu0
  %v150 = vadd.f32 %v58, %v149
  %151 = vmatmul.f32.gmra.mxu0 %v76
  %v152 = vpop.f32.mrf.mxu0
  %v153 = vadd.f32 %v63, %v152
  %154 = vdwg.mxu0
  %v155 = vmax.f32 %v144, 0.0
  %v156 = vmax.f32 %v147, 0.0
  %v157 = vmax.f32 %v150, 0.0
  %v158 = vmax.f32 %v153, 0.0
  %v159 = vld [vmem:[%s3] sm:$0xff]
  %v160 = vld [vmem:[%s3 + $0x8] sm:$0xff]
  %v161 = vld [vmem:[%s3 + $0x10] sm:$0xff]
  %v162 = vld [vmem:[%s3 + $0x18] sm:$0xff]
  %164 = vset.pattern.permute.xlu0 0
  %165 = vperm.xlu0 %164, %v159
  %v166 = vpop.permute.xlu0 %165
  %169 = vset.pattern.permute.xlu0 0
  %170 = vperm.xlu0 %169, %v160
  %v171 = vpop.permute.xlu0 %170
  %174 = vset.pattern.permute.xlu0 0
  %175 = vperm.xlu0 %174, %v161
  %v176 = vpop.permute.xlu0 %175
  %179 = vset.pattern.permute.xlu0 0
  %180 = vperm.xlu0 %179, %v162
  %v181 = vpop.permute.xlu0 %180
  %v183 = vmul.f32 %v155, %v166
  %v184 = vmul.f32 %v156, %v171
  %v185 = vmul.f32 %v157, %v176
  %v186 = vmul.f32 %v158, %v181
  %v187 = vadd.f32 %v183, %v184
  %v188 = vadd.f32 %v187, %v185
  %v189 = vadd.f32 %v188, %v186
  %v190 = vrot.slane %v189, 4
  %v191 = vadd.f32 %v189, %v190
  %v192 = vrot.slane %v191, 2
  %v193 = vadd.f32 %v191, %v192
  %v194 = vrot.slane %v193, 1
  %v195 = vadd.f32 %v193, %v194
  %s196 = sld [smem:[#allocation2]]
  %v197 = vstv %s196
  %v198 = vadd.f32 %v195, %v197
  %199 = vst [vmem:[%s5] sm:$0x1] %v198
  // Predicated region
  $region22: #{_mlp_forward.1} parent=0 // pred_check
    _
  $region23: #{_mlp_forward.1} parent=0 // pred_check_branch
    %201 = sbr.rel (0) target = $region25
  $region24: #{_mlp_forward.1} parent=0 // pred_region
    _
  $region25: #{_mlp_forward.1} parent=0 // pred_fallthru
    _
  // Predicated region
  $region26: #{_mlp_forward.1} parent=0 // pred_check
    _
  $region27: #{_mlp_forward.1} parent=0 // pred_check_branch
    %203 = sbr.rel (0) target = $region29
  $region28: #{_mlp_forward.1} parent=0 // pred_region
    _
  $region29: #{_mlp_forward.1} parent=0 // pred_fallthru
    _

// kernel: squeeze.1
$region0: #{squeeze.1}
  %s0 = inlined_call_operand.vmem [shape: f32[16], index: 0, kind: input, shape index: {}]
  %s1 = inlined_call_operand.hbm [shape: f32[2,8], index: 1, kind: output, shape index: {}]
  $region1: #{squeeze.1} parent=0
    #allocation0 [shape = 'u8[1024]{0}', space=vmem, size = 0x400, scoped, tag = 'operand span for operand 1']
    #allocation1 [shape = 's32[1]{0}', space=sflag, size = 0x4, scoped, tag = 'scoped memory for squeeze.1']
    #allocation2 [shape = 'u8[4096]{0}', space=vmem, size = 0x1000, scoped, tag = 'scoped mem for output reshape']
    #allocation3 [shape = 'u8[4096]{0}', space=vmem, size = 0x1000, scoped, tag = 'scoped mem for input reshape']
    %2 = vsyncpa [#allocation1], 0
    %s4 = ssub.s32 2, 1
    %v5 = vld [vmem:[%s0] sm:%s4]
    %6 = vst [vmem:[#allocation3] sm:%s4] %v5
    %v7 = vld [vmem:[#allocation3] sm:$0x1]
    %vm8 = vcmask 64512
    %9 = vst.msk [vmem:[#allocation2] sm:$0x1] %vm8, %v7
    %v10 = vld [vmem:[#allocation3] sm:$0x1]
    %11 = vrot.lane.b32.xlu0 %v10, 120
    %v12 = vpop.permute.xlu0 %11
    %vm13 = vcmask 64512
    %s14 = scalar_lea.vmem [#allocation2], 1
    %15 = vst.msk [vmem:[%s14] sm:$0x1] %vm13, %v12
    %s17 = ssub.s32 4, 1
    %v18 = vld [vmem:[#allocation2] sm:%s17]
    %s20 = ssub.s32 4, 1
    %21 = vst [vmem:[#allocation0] sm:%s20] %v18
    %23 = vsyncadd [#allocation1], 0
    %s25 = sshll.u32 [#allocation0], 4
    %s26 = int_to_ptr.vmem [resolvable:$true] %s25
    %s27 = sshll.u32 %s1, 4
    %s28 = int_to_ptr.hbm [resolvable:$true] %s27
    %30 = dma.vmem_to_hbm [thread:$0]  %s26, 32, %s28, [#allocation1]
    %32 = dma.done [#allocation1], 32
    %33 = vsyncpa [#allocation1], 1

// kernel: _mlp_forward.1
$region0: #{_mlp_forward.1}
  #allocation0 [shape = 'u32[]', space=smem, size = 0x4, offset = 0x4, fixed_abs, tag = 'smem constant byte address 0x4 - core index']
  #allocation1 [shape = 'u32[72,128]{1,0:T(1,128)}', space=vmem, size = 0x9000, scoped, tag = 'internal scratch']
  #allocation2 [shape = 'f32[1,1]{1,0:T(1,128)S(6)}', space=smem, size = 0x200, scoped, tag = 'scoped memory for _mlp_forward.1']
  %s0 = inlined_call_operand.vmem [shape: f32[16,32], index: 0, kind: input, shape index: {}]
  %s1 = inlined_call_operand.vmem [shape: f32[32,32], index: 1, kind: input, shape index: {}]
  %s2 = inlined_call_operand.vmem [shape: f32[32,1], index: 2, kind: input, shape index: {}]
  %s3 = inlined_call_operand.vmem [shape: f32[32,1], index: 3, kind: input, shape index: {}]
  %s4 = inlined_call_operand.<no memory space> [shape: f32[1,1], index: 4, kind: input, shape index: {}]
  %s5 = inlined_call_operand.vmem [shape: f32[1,16], index: 5, kind: output, shape index: {}]
  %s6 = sld [smem:[#allocation0]]
  $region30: #{_mlp_forward.1} parent=0
    _
  %s8 = ssub.s32 1, %s6
  %s9 = scalar_select 0, %s8, %s6
  %10 = sst [smem:[#allocation2]] %s4
  // Predicated region
  $region2: #{_mlp_forward.1} parent=0 // pred_check
    _
  $region3: #{_mlp_forward.1} parent=0 // pred_check_branch
    %12 = sbr.rel (0) target = $region5
  $region4: #{_mlp_forward.1} parent=0 // pred_region
    _
  $region5: #{_mlp_forward.1} parent=0 // pred_fallthru
    _
  // Predicated region
  $region6: #{_mlp_forward.1} parent=0 // pred_check
    _
  $region7: #{_mlp_forward.1} parent=0 // pred_check_branch
    %14 = sbr.rel (0) target = $region9
  $region8: #{_mlp_forward.1} parent=0 // pred_region
    _
  $region9: #{_mlp_forward.1} parent=0 // pred_fallthru
    _
  // Predicated region
  $region10: #{_mlp_forward.1} parent=0 // pred_check
    _
  $region11: #{_mlp_forward.1} parent=0 // pred_check_branch
    %16 = sbr.rel (0) target = $region13
  $region12: #{_mlp_forward.1} parent=0 // pred_region
    _
  $region13: #{_mlp_forward.1} parent=0 // pred_fallthru
    _
  // Predicated region
  $region14: #{_mlp_forward.1} parent=0 // pred_check
    _
  $region15: #{_mlp_forward.1} parent=0 // pred_check_branch
    %18 = sbr.rel (0) target = $region17
  $region16: #{_mlp_forward.1} parent=0 // pred_region
    _
  $region17: #{_mlp_forward.1} parent=0 // pred_fallthru
    _
  // Predicated region
  $region18: #{_mlp_forward.1} parent=0 // pred_check
    _
  $region19: #{_mlp_forward.1} parent=0 // pred_check_branch
    %20 = sbr.rel (0) target = $region21
  $region20: #{_mlp_forward.1} parent=0 // pred_region
    _
  $region21: #{_mlp_forward.1} parent=0 // pred_fallthru
    _
  %v21 = vld [vmem:[%s0] sm:$0xff]
  %v22 = vld [vmem:[%s0 + $0x8] sm:$0xff]
  %v23 = vld [vmem:[%s0 + $0x10] sm:$0xff]
  %v24 = vld [vmem:[%s0 + $0x18] sm:$0xff]
  %v25 = vld [vmem:[%s0 + $0x20] sm:$0xff]
  %v26 = vld [vmem:[%s0 + $0x28] sm:$0xff]
  %v27 = vld [vmem:[%s0 + $0x30] sm:$0xff]
  %v28 = vld [vmem:[%s0 + $0x38] sm:$0xff]
  %v29 = vld [vmem:[%s0 + $0x40] sm:$0xff]
  %v30 = vld [vmem:[%s0 + $0x48] sm:$0xff]
  %v31 = vld [vmem:[%s0 + $0x50] sm:$0xff]
  %v32 = vld [vmem:[%s0 + $0x58] sm:$0xff]
  %v33 = vld [vmem:[%s0 + $0x60] sm:$0xff]
  %v34 = vld [vmem:[%s0 + $0x68] sm:$0xff]
  %v35 = vld [vmem:[%s0 + $0x70] sm:$0xff]
  %v36 = vld [vmem:[%s0 + $0x78] sm:$0xff]
  %v37 = vld [vmem:[%s1] sm:$0xff]
  %v38 = vld [vmem:[%s1 + $0x8] sm:$0xff]
  %v39 = vld [vmem:[%s1 + $0x10] sm:$0xff]
  %v40 = vld [vmem:[%s1 + $0x18] sm:$0xff]
  %v41 = vld [vmem:[%s2] sm:$0xff]
  %v42 = vld [vmem:[%s2 + $0x8] sm:$0xff]
  %v43 = vld [vmem:[%s2 + $0x10] sm:$0xff]
  %v44 = vld [vmem:[%s2 + $0x18] sm:$0xff]
  %46 = vset.pattern.permute.xlu0 0
  %47 = vperm.xlu0 %46, %v41
  %v48 = vpop.permute.xlu0 %47
  %51 = vset.pattern.permute.xlu0 0
  %52 = vperm.xlu0 %51, %v42
  %v53 = vpop.permute.xlu0 %52
  %56 = vset.pattern.permute.xlu0 0
  %57 = vperm.xlu0 %56, %v43
  %v58 = vpop.permute.xlu0 %57
  %61 = vset.pattern.permute.xlu0 0
  %62 = vperm.xlu0 %61, %v44
  %v63 = vpop.permute.xlu0 %62
  %vm65 = vcmask 261120
  %v67 = vsel %vm65, %v37, 0
  %v70 = vsel %vm65, %v38, 0
  %v73 = vsel %vm65, %v39, 0
  %v76 = vsel %vm65, %v40, 0
  %v79 = vsel %vm65, %v21, 0
  %v82 = vsel %vm65, %v22, 0
  %v85 = vsel %vm65, %v23, 0
  %v88 = vsel %vm65, %v24, 0
  %v91 = vsel %vm65, %v25, 0
  %v94 = vsel %vm65, %v26, 0
  %v97 = vsel %vm65, %v27, 0
  %v100 = vsel %vm65, %v28, 0
  %v103 = vsel %vm65, %v29, 0
  %v106 = vsel %vm65, %v30, 0
  %v109 = vsel %vm65, %v31, 0
  %v112 = vsel %vm65, %v32, 0
  %v115 = vsel %vm65, %v33, 0
  %v118 = vsel %vm65, %v34, 0
  %v121 = vsel %vm65, %v35, 0
  %v124 = vsel %vm65, %v36, 0
  %126 = vmatpush.xpose.msra.mxu0 %v124
  %127 = vmatpush.xpose.msra.mxu0 %v121
  %128 = vmatpush.xpose.msra.mxu0 %v118
  %129 = vmatpush.xpose.msra.mxu0 %v115
  %130 = vmatpush.xpose.msra.mxu0 %v112
  %131 = vmatpush.xpose.msra.mxu0 %v109
  %132 = vmatpush.xpose.msra.mxu0 %v106
  %133 = vmatpush.xpose.msra.mxu0 %v103
  %134 = vmatpush.xpose.msra.mxu0 %v100
  %135 = vmatpush.xpose.msra.mxu0 %v97
  %136 = vmatpush.xpose.msra.mxu0 %v94
  %137 = vmatpush.xpose.msra.mxu0 %v91
  %138 = vmatpush.xpose.msra.mxu0 %v88
  %139 = vmatpush.xpose.msra.mxu0 %v85
  %140 = vmatpush.xpose.msra.mxu0 %v82
  %141 = vmatpush.xpose.msra.mxu0 %v79
  %142 = vmatmul.f32.gmra.mxu0 %v67
  %v143 = vpop.f32.mrf.mxu0
  %v144 = vadd.f32 %v48, %v143
  %145 = vmatmul.f32.gmra.mxu0 %v70
  %v146 = vpop.f32.mrf.mxu0
  %v147 = vadd.f32 %v53, %v146
  %148 = vmatmul.f32.gmra.mxu0 %v73
  %v149 = vpop.f32.mrf.mxu0
  %v150 = vadd.f32 %v58, %v149
  %151 = vmatmul.f32.gmra.mxu0 %v76
  %v152 = vpop.f32.mrf.mxu0
  %v153 = vadd.f32 %v63, %v152
  %154 = vdwg.mxu0
  %v155 = vmax.f32 %v144, 0.0
  %v156 = vmax.f32 %v147, 0.0
  %v157 = vmax.f32 %v150, 0.0
  %v158 = vmax.f32 %v153, 0.0
  %v159 = vld [vmem:[%s3] sm:$0xff]
  %v160 = vld [vmem:[%s3 + $0x8] sm:$0xff]
  %v161 = vld [vmem:[%s3 + $0x10] sm:$0xff]
  %v162 = vld [vmem:[%s3 + $0x18] sm:$0xff]
  %164 = vset.pattern.permute.xlu0 0
  %165 = vperm.xlu0 %164, %v159
  %v166 = vpop.permute.xlu0 %165
  %169 = vset.pattern.permute.xlu0 0
  %170 = vperm.xlu0 %169, %v160
  %v171 = vpop.permute.xlu0 %170
  %174 = vset.pattern.permute.xlu0 0
  %175 = vperm.xlu0 %174, %v161
  %v176 = vpop.permute.xlu0 %175
  %179 = vset.pattern.permute.xlu0 0
  %180 = vperm.xlu0 %179, %v162
  %v181 = vpop.permute.xlu0 %180
  %v183 = vmul.f32 %v155, %v166
  %v184 = vmul.f32 %v156, %v171
  %v185 = vmul.f32 %v157, %v176
  %v186 = vmul.f32 %v158, %v181
  %v187 = vadd.f32 %v183, %v184
  %v188 = vadd.f32 %v187, %v185
  %v189 = vadd.f32 %v188, %v186
  %v190 = vrot.slane %v189, 4
  %v191 = vadd.f32 %v189, %v190
  %v192 = vrot.slane %v191, 2
  %v193 = vadd.f32 %v191, %v192
  %v194 = vrot.slane %v193, 1
  %v195 = vadd.f32 %v193, %v194
  %s196 = sld [smem:[#allocation2]]
  %v197 = vstv %s196
  %v198 = vadd.f32 %v195, %v197
  %199 = vst [vmem:[%s5] sm:$0x1] %v198
  // Predicated region
  $region22: #{_mlp_forward.1} parent=0 // pred_check
    _
  $region23: #{_mlp_forward.1} parent=0 // pred_check_branch
    %201 = sbr.rel (0) target = $region25
  $region24: #{_mlp_forward.1} parent=0 // pred_region
    _
  $region25: #{_mlp_forward.1} parent=0 // pred_fallthru
    _
  // Predicated region
  $region26: #{_mlp_forward.1} parent=0 // pred_check
    _
  $region27: #{_mlp_forward.1} parent=0 // pred_check_branch
    %203 = sbr.rel (0) target = $region29
  $region28: #{_mlp_forward.1} parent=0 // pred_region
    _
  $region29: #{_mlp_forward.1} parent=0 // pred_fallthru
    _

</llo_original>
